<compile_context>
chip_gen: v5e
topology: v5e:2x2
jax: 0.10.0
libtpu: 0.0.40
codegen_flags: <defaults>
</compile_context>

<pallas_src>
import functools

import jax
import jax.numpy as jnp
from jax.experimental import pallas as pl
from jax.experimental.pallas import tpu as pltpu

ALPHA = 1.0
GAMMA = 2.0


def _focal_loss_kernel(pred_ref, tgt_ref, out_ref, *, gamma, rem_rows):
    # pred_ref: (TILE_N, C) logits (any float dtype), tgt_ref: (TILE_N, 1) int32,
    # out_ref:  (1, 1, 1) f32 per-tile partial sum.
    logits = pred_ref[...].astype(jnp.float32)                     # (T, C)
    c = logits.shape[-1]

    # Row-max: the only cross-lane XLU reduction left in the kernel.
    m = jnp.max(logits, axis=-1, keepdims=True)                    # (T, 1)
    shifted = logits - m                                           # (T, C), <= 0

    ones_c = jnp.ones((c, 1), dtype=jnp.float32)

    # sum_j exp(shifted[i, j]) via a ones-vector dot on the (otherwise idle) MXU.
    sum_exp = jnp.dot(jnp.exp(shifted), ones_c,
                      precision=jax.lax.Precision.HIGHEST,
                      preferred_element_type=jnp.float32)          # (T, 1)
    lse = jnp.log(sum_exp)                                         # (T, 1)

    # True-class shifted logit via a masked ones-vector dot (no f32 one-hot temp).
    class_ids = jax.lax.broadcasted_iota(jnp.int32, (1, c), 1)     # (1, C)
    masked = jnp.where(class_ids == tgt_ref[...], shifted, 0.0)    # (T, C)
    true_shifted = jnp.dot(masked, ones_c,
                           precision=jax.lax.Precision.HIGHEST,
                           preferred_element_type=jnp.float32)     # (T, 1)

    nll = lse - true_shifted            # per-sample CE; keep this form (not -log(pt))
    pt = jnp.exp(-nll)
    one_m_pt = 1.0 - pt
    if gamma == 2.0:
        focal_w = jnp.square(one_m_pt)                             # single VPU multiply
    elif float(gamma).is_integer():
        focal_w = jax.lax.integer_pow(one_m_pt, int(gamma))
    else:
        focal_w = jnp.power(jnp.maximum(one_m_pt, 0.0), gamma)     # clamp: avoid NaN
    focal = focal_w * nll               # alpha and 1/N are folded into the wrapper

    if rem_rows == 0:
        # Static: every tile is full, no masking anywhere.
        out_ref[...] = jnp.sum(focal, axis=0, keepdims=True).reshape(1, 1, 1)
    else:
        i = pl.program_id(0)
        last = pl.num_programs(0) - 1

        @pl.when(i != last)
        def _full_tile():
            out_ref[...] = jnp.sum(focal, axis=0, keepdims=True).reshape(1, 1, 1)

        @pl.when(i == last)
        def _partial_tile():
            # Only the final (partial) tile pays for the lane-sparse mask; padded rows
            # may hold NaN/Inf garbage but jnp.where selects 0.0, so nothing propagates.
            row_ids = jax.lax.broadcasted_iota(jnp.int32, focal.shape, 0)
            valid = jnp.where(row_ids < rem_rows, focal, 0.0)
            out_ref[...] = jnp.sum(valid, axis=0, keepdims=True).reshape(1, 1, 1)


def _pick_tile_n(n, c, itemsize):
    """Size the tile from the real VMEM working set and a ~24 MiB budget.

    Per row of a tile:
      * logits block, double-buffered:             2 * c_pad * itemsize
      * (tile,1) int32 targets, lane-padded to 128
        and double-buffered:                       2 * 128 * 4
      * ~4 live f32 full-width temporaries
        (upcast, shifted, exp, masked):            4 * c_pad * 4
    """
    c_pad = ((c + 127) // 128) * 128
    align = 16 if itemsize == 2 else 8          # bf16 packs sublanes in pairs
    per_row = 2 * c_pad * itemsize + 2 * 128 * 4 + 4 * c_pad * 4
    budget = 24 * 1024 * 1024                   # leaves headroom under the 48 MiB limit
    tile = budget // max(per_row, 1)
    tile = max(align, (tile // align) * align)
    if tile >= n:
        return n                                # single full-extent block is always legal
    return tile


def hybrid_focal_loss(pred, target, alpha=ALPHA, gamma=GAMMA, tile_n=None):
    """pred: (N, C) float logits (f32 or bf16); target: (N,) int class ids -> scalar."""
    n, c = pred.shape
    itemsize = jnp.dtype(pred.dtype).itemsize
    if tile_n is None:
        tile_n = _pick_tile_n(n, c, itemsize)
    tile_n = min(int(tile_n), n)
    if tile_n < n:
        align = 16 if itemsize == 2 else 8
        tile_n = max(align, (tile_n // align) * align)
    grid = pl.cdiv(n, tile_n)
    rem = n % tile_n                             # static; 0 when tiles divide N exactly

    tgt2d = target.astype(jnp.int32).reshape(n, 1)
    kernel = functools.partial(_focal_loss_kernel, gamma=float(gamma), rem_rows=rem)

    partials = pl.pallas_call(
        kernel,
        out_shape=jax.ShapeDtypeStruct((grid, 1, 1), jnp.float32),
        grid_spec=pltpu.PrefetchScalarGridSpec(
            num_scalar_prefetch=0,
            grid=(grid,),
            in_specs=[
                pl.BlockSpec((tile_n, c), lambda i: (i, 0)),    # logits tile
                pl.BlockSpec((tile_n, 1), lambda i: (i, 0)),    # targets tile
            ],
            out_specs=pl.BlockSpec((1, 1, 1), lambda i: (i, 0, 0)),  # per-tile partial
        ),
        compiler_params=pltpu.CompilerParams(
            dimension_semantics=("parallel",),   # independent tiles -> v7x uses both TCs
            vmem_limit_bytes=48 * 1024 * 1024,
        ),
    )(pred, tgt2d)

    # Finalize: sum of per-tile partials, fold alpha and the 1/N of the mean.
    return jnp.sum(partials) * jnp.float32(alpha / n)


def _reference_focal_loss(pred, target, alpha=ALPHA, gamma=GAMMA):
    logp = jax.nn.log_softmax(pred.astype(jnp.float32), axis=-1)
    ce = -jnp.take_along_axis(logp, target[:, None], axis=-1)[:, 0]
    pt = jnp.exp(-ce)
    return jnp.mean(alpha * (1.0 - pt) ** gamma * ce)


if __name__ == "__main__":
    key = jax.random.PRNGKey(0)
    k_pred, k_tgt = jax.random.split(key)

    N, C = 40, 128  # small: 40 samples, 128 classes (lane-aligned)
    pred = jax.random.normal(k_pred, (N, C), dtype=jnp.float32)
    target = jax.random.randint(k_tgt, (N,), 0, C, dtype=jnp.int32)
    ref = _reference_focal_loss(pred, target)

    # 1) multi-tile path with a partial (masked) last tile: 40 rows in 16-row tiles
    loss = jax.block_until_ready(hybrid_focal_loss(pred, target, tile_n=16))
    assert jnp.allclose(loss, ref, rtol=1e-4, atol=1e-6), (loss, ref)

    # 2) auto-sized tile path (single full-extent block at this small shape)
    loss_auto = jax.block_until_ready(hybrid_focal_loss(pred, target))
    assert jnp.allclose(loss_auto, ref, rtol=1e-4, atol=1e-6), (loss_auto, ref)

    # 3) bf16 logits fed natively (no wrapper upcast); kernel upcasts internally
    pred_bf16 = pred.astype(jnp.bfloat16)
    ref_bf16 = _reference_focal_loss(pred_bf16.astype(jnp.float32), target)
    loss_bf16 = jax.block_until_ready(hybrid_focal_loss(pred_bf16, target, tile_n=16))
    assert jnp.allclose(loss_bf16, ref_bf16, rtol=1e-4, atol=1e-6), (loss_bf16, ref_bf16)

    print("KERNEL_OK")
</pallas_src>

<mosaic_0001>
module attributes {stable_mosaic.version = 11 : i64} {
  func.func @_focal_loss_kernel(%arg0: i32, %arg1: memref<16x128xf32, #tpu.memory_space<vmem>>, %arg2: memref<16x1xi32, #tpu.memory_space<vmem>>, %arg3: memref<1x1x1xf32, #tpu.memory_space<vmem>>) attributes {dimension_semantics = [#tpu.dimension_semantics<parallel>], iteration_bounds = array<i64: 3>, scalar_prefetch = 0 : i64, scratch_operands = 0 : i64, tpu.core_type = #tpu.core_type<tc>, window_params = [{transform_indices = @transform_0, window_bounds = array<i64: 16, 128>}, {transform_indices = @transform_1, window_bounds = array<i64: 16, 1>}, {transform_indices = @transform_2, window_bounds = array<i64: 1, 1, 1>}]} {
    %c0 = arith.constant 0 : index
    %c0_0 = arith.constant 0 : index
    %0 = vector.load %arg1[%c0, %c0_0] : memref<16x128xf32, #tpu.memory_space<vmem>>, vector<16x128xf32>
    %cst = arith.constant dense<0xFF800000> : vector<16xf32>
    %1 = vector.multi_reduction <maximumf>, %0, %cst [1] : vector<16x128xf32> to vector<16xf32>
    %2 = vector.shape_cast %1 : vector<16xf32> to vector<16x1xf32>
    %3 = vector.broadcast %2 : vector<16x1xf32> to vector<16x128xf32>
    %4 = arith.subf %0, %3 : vector<16x128xf32>
    %cst_1 = arith.constant 1.000000e+00 : f32
    %5 = vector.broadcast %cst_1 : f32 to vector<128x1xf32>
    %6 = math.exp %4 : vector<16x128xf32>
    %cst_2 = arith.constant dense<0.000000e+00> : vector<16x1xf32>
    %7 = tpu.matmul %6, %5, %cst_2 {dimension_numbers = #tpu.dot_dimension_numbers<[1], [0], [0], [1], [0, 0, 1, 1], [], []>, precision = #tpu.contract_precision<fp32>} : vector<16x128xf32>, vector<128x1xf32>, vector<16x1xf32> -> vector<16x1xf32>
    %8 = math.log %7 : vector<16x1xf32>
    %9 = tpu.iota {dimensions = array<i32: 1>} : vector<1x128xi32>
    %c0_3 = arith.constant 0 : index
    %c0_4 = arith.constant 0 : index
    %10 = vector.load %arg2[%c0_3, %c0_4] : memref<16x1xi32, #tpu.memory_space<vmem>>, vector<16x1xi32>
    %11 = vector.broadcast %9 : vector<1x128xi32> to vector<16x128xi32>
    %12 = vector.broadcast %10 : vector<16x1xi32> to vector<16x128xi32>
    %13 = arith.cmpi eq, %11, %12 : vector<16x128xi32>
    %cst_5 = arith.constant 0.000000e+00 : f32
    %14 = vector.broadcast %cst_5 : f32 to vector<16x128xf32>
    %15 = arith.select %13, %4, %14 : vector<16x128xi1>, vector<16x128xf32>
    %cst_6 = arith.constant dense<0.000000e+00> : vector<16x1xf32>
    %16 = tpu.matmul %15, %5, %cst_6 {dimension_numbers = #tpu.dot_dimension_numbers<[1], [0], [0], [1], [0, 0, 1, 1], [], []>, precision = #tpu.contract_precision<fp32>} : vector<16x128xf32>, vector<128x1xf32>, vector<16x1xf32> -> vector<16x1xf32>
    %17 = arith.subf %8, %16 : vector<16x1xf32>
    %cst_7 = arith.constant 0.000000e+00 : f32
    %18 = vector.broadcast %cst_7 : f32 to vector<16x1xf32>
    %19 = arith.subf %18, %17 : vector<16x1xf32>
    %20 = math.exp %19 : vector<16x1xf32>
    %cst_8 = arith.constant 1.000000e+00 : f32
    %21 = vector.broadcast %cst_8 : f32 to vector<16x1xf32>
    %22 = arith.subf %21, %20 : vector<16x1xf32>
    %23 = arith.mulf %22, %22 : vector<16x1xf32>
    %24 = arith.mulf %23, %17 : vector<16x1xf32>
    %c2_i32 = arith.constant 2 : i32
    %25 = arith.cmpi ne, %arg0, %c2_i32 : i32
    %26 = arith.extui %25 : i1 to i32
    %c0_i32 = arith.constant 0 : i32
    %27 = arith.cmpi ne, %26, %c0_i32 : i32
    scf.if %27 {
      %cst_11 = arith.constant dense<0.000000e+00> : vector<1xf32>
      %31 = vector.multi_reduction <add>, %24, %cst_11 [0] : vector<16x1xf32> to vector<1xf32>
      %32 = vector.shape_cast %31 : vector<1xf32> to vector<1x1xf32>
      %33 = vector.shape_cast %32 : vector<1x1xf32> to vector<1x1x1xf32>
      %c0_12 = arith.constant 0 : index
      %c0_13 = arith.constant 0 : index
      %c0_14 = arith.constant 0 : index
      %34 = vector.load %arg3[%c0_12, %c0_13, %c0_14] : memref<1x1x1xf32, #tpu.memory_space<vmem>>, vector<1x1x1xf32>
      tpu.vector_store %arg3[%c0_12, %c0_13, %c0_14], %33 {strides = array<i32>} : memref<1x1x1xf32, #tpu.memory_space<vmem>>, vector<1x1x1xf32>,
    } else {
    }
    %c2_i32_9 = arith.constant 2 : i32
    %28 = arith.cmpi eq, %arg0, %c2_i32_9 : i32
    %29 = arith.extui %28 : i1 to i32
    %c0_i32_10 = arith.constant 0 : i32
    %30 = arith.cmpi ne, %29, %c0_i32_10 : i32
    scf.if %30 {
      %31 = tpu.iota {dimensions = array<i32: 0>} : vector<16x1xi32>
      %c8_i32 = arith.constant 8 : i32
      %32 = vector.broadcast %c8_i32 : i32 to vector<16x1xi32>
      %33 = arith.cmpi slt, %31, %32 : vector<16x1xi32>
      %cst_11 = arith.constant 0.000000e+00 : f32
      %34 = vector.broadcast %cst_11 : f32 to vector<16x1xf32>
      %35 = arith.select %33, %24, %34 : vector<16x1xi1>, vector<16x1xf32>
      %cst_12 = arith.constant dense<0.000000e+00> : vector<1xf32>
      %36 = vector.multi_reduction <add>, %35, %cst_12 [0] : vector<16x1xf32> to vector<1xf32>
      %37 = vector.shape_cast %36 : vector<1xf32> to vector<1x1xf32>
      %38 = vector.shape_cast %37 : vector<1x1xf32> to vector<1x1x1xf32>
      %c0_13 = arith.constant 0 : index
      %c0_14 = arith.constant 0 : index
      %c0_15 = arith.constant 0 : index
      %39 = vector.load %arg3[%c0_13, %c0_14, %c0_15] : memref<1x1x1xf32, #tpu.memory_space<vmem>>, vector<1x1x1xf32>
      tpu.vector_store %arg3[%c0_13, %c0_14, %c0_15], %38 {strides = array<i32>} : memref<1x1x1xf32, #tpu.memory_space<vmem>>, vector<1x1x1xf32>,
    } else {
    }
    return
  }
  func.func @transform_0(%arg0: i32) -> (i32, i32) {
    %c0_i32 = arith.constant 0 : i32
    %c0_i32_0 = arith.constant 0 : i32
    return %arg0, %c0_i32 : i32, i32
  }
  func.func @transform_1(%arg0: i32) -> (i32, i32) {
    %c0_i32 = arith.constant 0 : i32
    %c0_i32_0 = arith.constant 0 : i32
    return %arg0, %c0_i32 : i32, i32
  }
  func.func @transform_2(%arg0: i32) -> (i32, i32, i32) {
    %c0_i32 = arith.constant 0 : i32
    %c0_i32_0 = arith.constant 0 : i32
    %c0_i32_1 = arith.constant 0 : i32
    return %arg0, %c0_i32, %c0_i32_0 : i32, i32, i32
  }
}

</mosaic_0001>

<llo_original>
// kernel: tpu_custom_call.1
$region0: #{tpu_custom_call.1}
  #allocation0 [shape = 'u32[]', space=smem, size = 0x4, offset = 0x4, fixed_abs, tag = 'smem constant byte address 0x4 - core index']
  #allocation1 [shape = 'u32[72,128]{1,0:T(1,128)}', space=vmem, size = 0x9000, scoped, tag = 'internal scratch']
  %s0 = inlined_call_operand.vmem [shape: f32[40,128], index: 0, kind: input, shape index: {}]
  %s1 = inlined_call_operand.vmem [shape: s32[40,1], index: 1, kind: input, shape index: {}]
  %s2 = inlined_call_operand.vmem [shape: f32[3,1,1], index: 2, kind: output, shape index: {}]
  %s3 = sld [smem:[#allocation0]]
  $region49: #{tpu_custom_call.1} parent=0
    _
  %s5 = ssub.s32 1, %s3
  %s6 = scalar_select 0, %s5, %s3
  loop: start=0, step=1, limit=5
  $region2: #{tpu_custom_call.1} parent=0 // loop_pre_header
    _
  $region3: #{tpu_custom_call.1} parent=0 // loop_header
    %s8 = sphi 0, %s12
    %p9 = scmp.ge.s32.totalorder %s8, 5
    %s18 = sphi 0, %s20
    %s21 = sphi 0, %s18
    %s22 = sphi 0, %s21
    %s38 = sphi 0, %s22
    %s44 = sphi 0, %s46
    %s47 = sphi 0, %s44
    %s48 = sphi 0, %s47
    %s64 = sphi 0, %s48
    %s70 = sphi 0, %s72
    %s73 = sphi 0, %s70
    %s74 = sphi 0, %s73
    %s90 = sphi 0, %s74
  $region4: #{tpu_custom_call.1} parent=0 // loop_header_branch
    %11 = sbr.rel (%p9) target = $region8
  $region5: #{tpu_custom_call.1} parent=0 // loop_body
    %s13 = ssub.s32 %s8, 1
    %s14 = ssub.s32 %s8, 2
    %s15 = sadd.s32 %s8, 1
    %s16 = ssub.s32 %s8, %s15
    %p17 = scmp.eq.s32.totalorder %s16, 0
    %s19 = sadd.s32 %s18, 1
    %s20 = scalar_select %p17, %s18, %s19
    %p23 = pneg %p17
    %p24 = scmp.eq.s32.totalorder %s8, 2
    %p25 = por %p23, %p24
    %p26 = scmp.ne.s32.totalorder %s18, %s21
    %p27 = scmp.eq.s32.totalorder %s8, 0
    %p28 = por %p26, %p27
    %p29 = scmp.ne.s32.totalorder %s18, %s21
    %p30 = scmp.eq.s32.totalorder %s13, 2
    %p31 = por %p29, %p30
    %p32 = scmp.ne.s32.totalorder %s21, %s22
    %p33 = scmp.eq.s32.totalorder %s13, 0
    %p34 = por %p32, %p33
    %p35 = scmp.ne.s32.totalorder %s21, %s22
    %p36 = scmp.eq.s32.totalorder %s14, 2
    %p37 = por %p35, %p36
    %p39 = scmp.ne.s32.totalorder %s22, %s38
    %p40 = scmp.eq.s32.totalorder %s14, 0
    %p41 = por %p39, %p40
    %s42 = ssub.s32 %s8, %s15
    %p43 = scmp.eq.s32.totalorder %s42, 0
    %s45 = sadd.s32 %s44, 1
    %s46 = scalar_select %p43, %s44, %s45
    %p49 = pneg %p43
    %p50 = scmp.eq.s32.totalorder %s8, 2
    %p51 = por %p49, %p50
    %p52 = scmp.ne.s32.totalorder %s44, %s47
    %p53 = scmp.eq.s32.totalorder %s8, 0
    %p54 = por %p52, %p53
    %p55 = scmp.ne.s32.totalorder %s44, %s47
    %p56 = scmp.eq.s32.totalorder %s13, 2
    %p57 = por %p55, %p56
    %p58 = scmp.ne.s32.totalorder %s47, %s48
    %p59 = scmp.eq.s32.totalorder %s13, 0
    %p60 = por %p58, %p59
    %p61 = scmp.ne.s32.totalorder %s47, %s48
    %p62 = scmp.eq.s32.totalorder %s14, 2
    %p63 = por %p61, %p62
    %p65 = scmp.ne.s32.totalorder %s48, %s64
    %p66 = scmp.eq.s32.totalorder %s14, 0
    %p67 = por %p65, %p66
    %s68 = ssub.s32 %s8, %s15
    %p69 = scmp.eq.s32.totalorder %s68, 0
    %s71 = sadd.s32 %s70, 1
    %s72 = scalar_select %p69, %s70, %s71
    %p75 = pneg %p69
    %p76 = scmp.eq.s32.totalorder %s8, 2
    %p77 = por %p75, %p76
    %p78 = scmp.ne.s32.totalorder %s70, %s73
    %p79 = scmp.eq.s32.totalorder %s8, 0
    %p80 = por %p78, %p79
    %p81 = scmp.ne.s32.totalorder %s70, %s73
    %p82 = scmp.eq.s32.totalorder %s13, 2
    %p83 = por %p81, %p82
    %p84 = scmp.ne.s32.totalorder %s73, %s74
    %p85 = scmp.eq.s32.totalorder %s13, 0
    %p86 = por %p84, %p85
    %p87 = scmp.ne.s32.totalorder %s73, %s74
    %p88 = scmp.eq.s32.totalorder %s14, 2
    %p89 = por %p87, %p88
    %p91 = scmp.ne.s32.totalorder %s74, %s90
    %p92 = scmp.eq.s32.totalorder %s14, 0
    %p93 = por %p91, %p92
    %p94 = scmp.le.s32.totalorder 1, %s8
    %p95 = scmp.lt.s32.totalorder %s8, 4
    %p96 = pnand %p94, %p95
    %p97 = pneg %p96
    // Predicated region
    $region9: #{tpu_custom_call.1} parent=5 // pred_check
      _
    $region10: #{tpu_custom_call.1} parent=5 // pred_check_branch
      %99 = sbr.rel (%p96) target = $region12
    $region11: #{tpu_custom_call.1} parent=5 // pred_region
      %s100 = ssub.s32 %s8, 1
    $region12: #{tpu_custom_call.1} parent=5 // pred_fallthru
      _
    %p101 = scmp.lt.s32.totalorder %s8, 3
    // Predicated region
    $region13: #{tpu_custom_call.1} parent=5 // pred_check
      %p102 = pneg %p101
    $region14: #{tpu_custom_call.1} parent=5 // pred_check_branch
      %104 = sbr.rel (%p102) target = $region16
    $region15: #{tpu_custom_call.1} parent=5 // pred_region
      // Predicated region
      $region17: #{tpu_custom_call.1} parent=15 // pred_check
        %p105 = pneg %p28
      $region18: #{tpu_custom_call.1} parent=15 // pred_check_branch
        %107 = sbr.rel (%p105) target = $region20
      $region19: #{tpu_custom_call.1} parent=15 // pred_region
        %s108 = smul.u32 2, %s8
        %s109 = ssub.s32 5, %s108
        %p110 = scmp.lt.s32.totalorder %s109, 2
        %s111 = scalar_select %p110, %s109, 2
        %s112 = smul.u32 8, %s111
        %p113 = scmp.lt.s32.totalorder %s108, 4
        %s114 = scalar_select %p113, %s108, 4
        %s115 = smul.addr %s114, 8
        %s116 = scalar_lea.vmem %s0, %s115
        %s117 = smul.u32 2, %s8
        %s118 = ssub.s32 5, %s117
        %p119 = scmp.lt.s32.totalorder %s118, 2
        %s120 = scalar_select %p119, %s118, 2
        %s121 = smul.u32 8, %s120
      $region20: #{tpu_custom_call.1} parent=15 // pred_fallthru
        _
      // Predicated region
      $region21: #{tpu_custom_call.1} parent=15 // pred_check
        %p122 = pneg %p54
      $region22: #{tpu_custom_call.1} parent=15 // pred_check_branch
        %124 = sbr.rel (%p122) target = $region24
      $region23: #{tpu_custom_call.1} parent=15 // pred_region
        %s125 = smul.u32 2, %s8
        %s126 = ssub.s32 5, %s125
        %p127 = scmp.lt.s32.totalorder %s126, 2
        %s128 = scalar_select %p127, %s126, 2
        %s129 = smul.u32 8, %s128
        %p130 = scmp.lt.s32.totalorder %s125, 4
        %s131 = scalar_select %p130, %s125, 4
        %s132 = smul.addr %s131, 8
        %s133 = scalar_lea.vmem %s1, %s132
        %s134 = smul.u32 2, %s8
        %s135 = ssub.s32 5, %s134
        %p136 = scmp.lt.s32.totalorder %s135, 2
        %s137 = scalar_select %p136, %s135, 2
        %s138 = smul.u32 8, %s137
      $region24: #{tpu_custom_call.1} parent=15 // pred_fallthru
        _
    $region16: #{tpu_custom_call.1} parent=5 // pred_fallthru
      _
    %p139 = scmp.le.s32.totalorder 1, %s8
    %p140 = scmp.lt.s32.totalorder %s8, 4
    %p141 = pnand %p139, %p140
    %p142 = pneg %p141
    // Predicated region
    $region25: #{tpu_custom_call.1} parent=5 // pred_check
      _
    $region26: #{tpu_custom_call.1} parent=5 // pred_check_branch
      %144 = sbr.rel (%p141) target = $region28
    $region27: #{tpu_custom_call.1} parent=5 // pred_region
      %s145 = ssub.s32 %s8, 1
      %s146 = smul.u32 2, %s13
      %s147 = ssub.s32 5, %s146
      %p148 = scmp.lt.s32.totalorder %s147, 2
      %s149 = scalar_select %p148, %s147, 2
      %s150 = smul.u32 8, %s149
      %p151 = scmp.lt.s32.totalorder %s146, 4
      %s152 = scalar_select %p151, %s146, 4
      %s153 = smul.addr %s152, 8
      %s154 = scalar_lea.vmem %s0, %s153
      %p155 = pneg %p34
      %p156 = pneg %p31
      %s157 = smul.u32 2, %s13
      %s158 = ssub.s32 5, %s157
      %p159 = scmp.lt.s32.totalorder %s158, 2
      %s160 = scalar_select %p159, %s158, 2
      %s161 = smul.u32 8, %s160
      %p162 = scmp.lt.s32.totalorder %s157, 4
      %s163 = scalar_select %p162, %s157, 4
      %s164 = smul.addr %s163, 8
      %s165 = scalar_lea.vmem %s1, %s164
      %p166 = pneg %p60
      %p167 = pneg %p57
      %p168 = pneg %p86
      %p169 = pneg %p83
      %p170 = scmp.lt.s32.totalorder %s13, 2
      %s171 = scalar_select %p170, %s13, 2
      %s172 = scalar_lea.vmem %s2, %s171
      %s173 = smul.u32 2, %s13
      %s174 = ssub.s32 5, %s173
      %p175 = scmp.lt.s32.totalorder %s174, 2
      %s176 = scalar_select %p175, %s174, 2
      %s177 = smul.u32 8, %s176
      %p178 = scmp.lt.s32.totalorder %s173, 4
      %s179 = scalar_select %p178, %s173, 4
      %s180 = smul.addr %s179, 8
      %s181 = scalar_lea.vmem %s0, %s180
      %s182 = smul.u32 2, %s13
      %s183 = ssub.s32 5, %s182
      %p184 = scmp.lt.s32.totalorder %s183, 2
      %s185 = scalar_select %p184, %s183, 2
      %s186 = smul.u32 8, %s185
      %s187 = smul.u32 2, %s13
      %s188 = ssub.s32 5, %s187
      %p189 = scmp.lt.s32.totalorder %s188, 2
      %s190 = scalar_select %p189, %s188, 2
      %s191 = smul.u32 8, %s190
      %p192 = scmp.lt.s32.totalorder %s187, 4
      %s193 = scalar_select %p192, %s187, 4
      %s194 = smul.addr %s193, 8
      %s195 = scalar_lea.vmem %s1, %s194
      %s196 = smul.u32 2, %s13
      %s197 = ssub.s32 5, %s196
      %p198 = scmp.lt.s32.totalorder %s197, 2
      %s199 = scalar_select %p198, %s197, 2
      %s200 = smul.u32 8, %s199
      %p201 = scmp.lt.s32.totalorder %s13, 2
      %s202 = scalar_select %p201, %s13, 2
      %s203 = scalar_lea.vmem %s2, %s202
      %v204 = vld [vmem:[%s181] sm:$0xff]
      %v205 = vld [vmem:[%s181 + $0x8] sm:$0xff]
      %206 = vmax.xlane.f32.xlu0 %v204
      %v207 = vpop.xlane.xlu0 %206
      %208 = vmax.xlane.f32.xlu0 %v205
      %v209 = vpop.xlane.xlu0 %208
      %v210 = vsub.f32 %v204, %v207
      %v211 = vsub.f32 %v205, %v209
      %v212 = vmul.f32 %v210, 1.442695
      %v213 = vpow.pop %v212
      %v214 = vmul.f32 %v211, 1.442695
      %v215 = vpow.pop %v214
      %216 = vmatpush.msra.mxu0 1.0
      %217 = vmatpush.msra.mxu0 1.0
      %218 = vmatpush.msra.mxu0 1.0
      %219 = vmatpush.msra.mxu0 1.0
      %220 = vmatpush.msra.mxu0 1.0
      %221 = vmatpush.msra.mxu0 1.0
      %222 = vmatpush.msra.mxu0 1.0
      %223 = vmatpush.msra.mxu0 1.0
      %224 = vmatpush.msra.mxu0 1.0
      %225 = vmatpush.msra.mxu0 1.0
      %226 = vmatpush.msra.mxu0 1.0
      %227 = vmatpush.msra.mxu0 1.0
      %228 = vmatpush.msra.mxu0 1.0
      %229 = vmatpush.msra.mxu0 1.0
      %230 = vmatpush.msra.mxu0 1.0
      %231 = vmatpush.msra.mxu0 1.0
      %v232 = vand.u32 %v213, 4294901760
      %v233 = vsub.f32 %v213, %v232
      %v234 = vand.u32 %v233, 4294901760
      %v235 = vsub.f32 %v233, %v234
      %v236 = vand.u32 %v235, 4294901760
      %237 = vmatmul.f32.gmra.mxu0 %v236
      %v238 = vpop.f32.mrf.mxu0
      %v239 = vadd.f32 0.0, %v238
      %v240 = vand.u32 %v215, 4294901760
      %v241 = vsub.f32 %v215, %v240
      %v242 = vand.u32 %v241, 4294901760
      %v243 = vsub.f32 %v241, %v242
      %v244 = vand.u32 %v243, 4294901760
      %245 = vmatmul.f32.gmra.mxu0 %v244
      %v246 = vpop.f32.mrf.mxu0
      %v247 = vadd.f32 0.0, %v246
      %248 = vdwg.mxu0
      %249 = vmatpush.msra.mxu0 0.0
      %250 = vmatpush.msra.mxu0 0.0
      %251 = vmatpush.msra.mxu0 0.0
      %252 = vmatpush.msra.mxu0 0.0
      %253 = vmatpush.msra.mxu0 0.0
      %254 = vmatpush.msra.mxu0 0.0
      %255 = vmatpush.msra.mxu0 0.0
      %256 = vmatpush.msra.mxu0 0.0
      %257 = vmatpush.msra.mxu0 0.0
      %258 = vmatpush.msra.mxu0 0.0
      %259 = vmatpush.msra.mxu0 0.0
      %260 = vmatpush.msra.mxu0 0.0
      %261 = vmatpush.msra.mxu0 0.0
      %262 = vmatpush.msra.mxu0 0.0
      %263 = vmatpush.msra.mxu0 0.0
      %264 = vmatpush.msra.mxu0 0.0
      %v265 = vand.u32 %v213, 4294901760
      %266 = vmatmul.f32.gmra.mxu0 %v265
      %v267 = vpop.f32.mrf.mxu0
      %v268 = vadd.f32 %v239, %v267
      %v269 = vand.u32 %v215, 4294901760
      %270 = vmatmul.f32.gmra.mxu0 %v269
      %v271 = vpop.f32.mrf.mxu0
      %v272 = vadd.f32 %v247, %v271
      %273 = vdwg.mxu0
      %274 = vmatpush.msra.mxu0 0.0
      %275 = vmatpush.msra.mxu0 0.0
      %276 = vmatpush.msra.mxu0 0.0
      %277 = vmatpush.msra.mxu0 0.0
      %278 = vmatpush.msra.mxu0 0.0
      %279 = vmatpush.msra.mxu0 0.0
      %280 = vmatpush.msra.mxu0 0.0
      %281 = vmatpush.msra.mxu0 0.0
      %282 = vmatpush.msra.mxu0 0.0
      %283 = vmatpush.msra.mxu0 0.0
      %284 = vmatpush.msra.mxu0 0.0
      %285 = vmatpush.msra.mxu0 0.0
      %286 = vmatpush.msra.mxu0 0.0
      %287 = vmatpush.msra.mxu0 0.0
      %288 = vmatpush.msra.mxu0 0.0
      %289 = vmatpush.msra.mxu0 0.0
      %v290 = vand.u32 %v213, 4294901760
      %v291 = vsub.f32 %v213, %v290
      %292 = vmatmul.f32.gmra.mxu0 %v291
      %v293 = vpop.f32.mrf.mxu0
      %v294 = vadd.f32 %v268, %v293
      %v295 = vand.u32 %v215, 4294901760
      %v296 = vsub.f32 %v215, %v295
      %297 = vmatmul.f32.gmra.mxu0 %v296
      %v298 = vpop.f32.mrf.mxu0
      %v299 = vadd.f32 %v272, %v298
      %300 = vdwg.mxu0
      %301 = vmatpush.msra.mxu0 1.0
      %302 = vmatpush.msra.mxu0 1.0
      %303 = vmatpush.msra.mxu0 1.0
      %304 = vmatpush.msra.mxu0 1.0
      %305 = vmatpush.msra.mxu0 1.0
      %306 = vmatpush.msra.mxu0 1.0
      %307 = vmatpush.msra.mxu0 1.0
      %308 = vmatpush.msra.mxu0 1.0
      %309 = vmatpush.msra.mxu0 1.0
      %310 = vmatpush.msra.mxu0 1.0
      %311 = vmatpush.msra.mxu0 1.0
      %312 = vmatpush.msra.mxu0 1.0
      %313 = vmatpush.msra.mxu0 1.0
      %314 = vmatpush.msra.mxu0 1.0
      %315 = vmatpush.msra.mxu0 1.0
      %316 = vmatpush.msra.mxu0 1.0
      %v317 = vand.u32 %v213, 4294901760
      %v318 = vsub.f32 %v213, %v317
      %v319 = vand.u32 %v318, 4294901760
      %320 = vmatmul.f32.gmra.mxu0 %v319
      %v321 = vpop.f32.mrf.mxu0
      %v322 = vadd.f32 %v294, %v321
      %v323 = vand.u32 %v215, 4294901760
      %v324 = vsub.f32 %v215, %v323
      %v325 = vand.u32 %v324, 4294901760
      %326 = vmatmul.f32.gmra.mxu0 %v325
      %v327 = vpop.f32.mrf.mxu0
      %v328 = vadd.f32 %v299, %v327
      %329 = vdwg.mxu0
      %330 = vmatpush.msra.mxu0 0.0
      %331 = vmatpush.msra.mxu0 0.0
      %332 = vmatpush.msra.mxu0 0.0
      %333 = vmatpush.msra.mxu0 0.0
      %334 = vmatpush.msra.mxu0 0.0
      %335 = vmatpush.msra.mxu0 0.0
      %336 = vmatpush.msra.mxu0 0.0
      %337 = vmatpush.msra.mxu0 0.0
      %338 = vmatpush.msra.mxu0 0.0
      %339 = vmatpush.msra.mxu0 0.0
      %340 = vmatpush.msra.mxu0 0.0
      %341 = vmatpush.msra.mxu0 0.0
      %342 = vmatpush.msra.mxu0 0.0
      %343 = vmatpush.msra.mxu0 0.0
      %344 = vmatpush.msra.mxu0 0.0
      %345 = vmatpush.msra.mxu0 0.0
      %v346 = vand.u32 %v213, 4294901760
      %347 = vmatmul.f32.gmra.mxu0 %v346
      %v348 = vpop.f32.mrf.mxu0
      %v349 = vadd.f32 %v322, %v348
      %v350 = vand.u32 %v215, 4294901760
      %351 = vmatmul.f32.gmra.mxu0 %v350
      %v352 = vpop.f32.mrf.mxu0
      %v353 = vadd.f32 %v328, %v352
      %354 = vdwg.mxu0
      %355 = vmatpush.msra.mxu0 1.0
      %356 = vmatpush.msra.mxu0 1.0
      %357 = vmatpush.msra.mxu0 1.0
      %358 = vmatpush.msra.mxu0 1.0
      %359 = vmatpush.msra.mxu0 1.0
      %360 = vmatpush.msra.mxu0 1.0
      %361 = vmatpush.msra.mxu0 1.0
      %362 = vmatpush.msra.mxu0 1.0
      %363 = vmatpush.msra.mxu0 1.0
      %364 = vmatpush.msra.mxu0 1.0
      %365 = vmatpush.msra.mxu0 1.0
      %366 = vmatpush.msra.mxu0 1.0
      %367 = vmatpush.msra.mxu0 1.0
      %368 = vmatpush.msra.mxu0 1.0
      %369 = vmatpush.msra.mxu0 1.0
      %370 = vmatpush.msra.mxu0 1.0
      %v371 = vand.u32 %v213, 4294901760
      %372 = vmatmul.f32.gmra.mxu0 %v371
      %v373 = vpop.f32.mrf.mxu0
      %v374 = vadd.f32 %v349, %v373
      %v375 = vand.u32 %v215, 4294901760
      %376 = vmatmul.f32.gmra.mxu0 %v375
      %v377 = vpop.f32.mrf.mxu0
      %v378 = vadd.f32 %v353, %v377
      %379 = vdwg.mxu0
      %v380 = vlog2.pop %v374
      %v381 = vmul.f32 %v380, 0.6931472
      %v382 = vlog2.pop %v378
      %v383 = vmul.f32 %v382, 0.6931472
      %v384 = vlaneseq
      %v385 = vand.u32 %v384, 127
      %v386 = vld [vmem:[%s195] sm:$0xff]
      %v387 = vld [vmem:[%s195 + $0x8] sm:$0xff]
      %388 = vset.pattern.permute.xlu0 0
      %389 = vperm.xlu0 %388, %v386
      %v390 = vpop.permute.xlu0 %389
      %391 = vset.pattern.permute.xlu0 0
      %392 = vperm.xlu0 %391, %v387
      %v393 = vpop.permute.xlu0 %392
      %vm394 = vcmp.eq.s32.totalorder %v385, %v390
      %vm395 = vcmp.eq.s32.totalorder %v385, %v393
      %v396 = vsel %vm394, %v210, 0.0
      %v397 = vsel %vm395, %v211, 0.0
      %398 = vmatpush.msra.mxu0 1.0
      %399 = vmatpush.msra.mxu0 1.0
      %400 = vmatpush.msra.mxu0 1.0
      %401 = vmatpush.msra.mxu0 1.0
      %402 = vmatpush.msra.mxu0 1.0
      %403 = vmatpush.msra.mxu0 1.0
      %404 = vmatpush.msra.mxu0 1.0
      %405 = vmatpush.msra.mxu0 1.0
      %406 = vmatpush.msra.mxu0 1.0
      %407 = vmatpush.msra.mxu0 1.0
      %408 = vmatpush.msra.mxu0 1.0
      %409 = vmatpush.msra.mxu0 1.0
      %410 = vmatpush.msra.mxu0 1.0
      %411 = vmatpush.msra.mxu0 1.0
      %412 = vmatpush.msra.mxu0 1.0
      %413 = vmatpush.msra.mxu0 1.0
      %v414 = vand.u32 %v396, 4294901760
      %v415 = vsub.f32 %v396, %v414
      %v416 = vand.u32 %v415, 4294901760
      %v417 = vsub.f32 %v415, %v416
      %v418 = vand.u32 %v417, 4294901760
      %419 = vmatmul.f32.gmra.mxu0 %v418
      %v420 = vpop.f32.mrf.mxu0
      %v421 = vadd.f32 0.0, %v420
      %v422 = vand.u32 %v397, 4294901760
      %v423 = vsub.f32 %v397, %v422
      %v424 = vand.u32 %v423, 4294901760
      %v425 = vsub.f32 %v423, %v424
      %v426 = vand.u32 %v425, 4294901760
      %427 = vmatmul.f32.gmra.mxu0 %v426
      %v428 = vpop.f32.mrf.mxu0
      %v429 = vadd.f32 0.0, %v428
      %430 = vdwg.mxu0
      %431 = vmatpush.msra.mxu0 0.0
      %432 = vmatpush.msra.mxu0 0.0
      %433 = vmatpush.msra.mxu0 0.0
      %434 = vmatpush.msra.mxu0 0.0
      %435 = vmatpush.msra.mxu0 0.0
      %436 = vmatpush.msra.mxu0 0.0
      %437 = vmatpush.msra.mxu0 0.0
      %438 = vmatpush.msra.mxu0 0.0
      %439 = vmatpush.msra.mxu0 0.0
      %440 = vmatpush.msra.mxu0 0.0
      %441 = vmatpush.msra.mxu0 0.0
      %442 = vmatpush.msra.mxu0 0.0
      %443 = vmatpush.msra.mxu0 0.0
      %444 = vmatpush.msra.mxu0 0.0
      %445 = vmatpush.msra.mxu0 0.0
      %446 = vmatpush.msra.mxu0 0.0
      %v447 = vand.u32 %v396, 4294901760
      %448 = vmatmul.f32.gmra.mxu0 %v447
      %v449 = vpop.f32.mrf.mxu0
      %v450 = vadd.f32 %v421, %v449
      %v451 = vand.u32 %v397, 4294901760
      %452 = vmatmul.f32.gmra.mxu0 %v451
      %v453 = vpop.f32.mrf.mxu0
      %v454 = vadd.f32 %v429, %v453
      %455 = vdwg.mxu0
      %456 = vmatpush.msra.mxu0 0.0
      %457 = vmatpush.msra.mxu0 0.0
      %458 = vmatpush.msra.mxu0 0.0
      %459 = vmatpush.msra.mxu0 0.0
      %460 = vmatpush.msra.mxu0 0.0
      %461 = vmatpush.msra.mxu0 0.0
      %462 = vmatpush.msra.mxu0 0.0
      %463 = vmatpush.msra.mxu0 0.0
      %464 = vmatpush.msra.mxu0 0.0
      %465 = vmatpush.msra.mxu0 0.0
      %466 = vmatpush.msra.mxu0 0.0
      %467 = vmatpush.msra.mxu0 0.0
      %468 = vmatpush.msra.mxu0 0.0
      %469 = vmatpush.msra.mxu0 0.0
      %470 = vmatpush.msra.mxu0 0.0
      %471 = vmatpush.msra.mxu0 0.0
      %v472 = vand.u32 %v396, 4294901760
      %v473 = vsub.f32 %v396, %v472
      %474 = vmatmul.f32.gmra.mxu0 %v473
      %v475 = vpop.f32.mrf.mxu0
      %v476 = vadd.f32 %v450, %v475
      %v477 = vand.u32 %v397, 4294901760
      %v478 = vsub.f32 %v397, %v477
      %479 = vmatmul.f32.gmra.mxu0 %v478
      %v480 = vpop.f32.mrf.mxu0
      %v481 = vadd.f32 %v454, %v480
      %482 = vdwg.mxu0
      %483 = vmatpush.msra.mxu0 1.0
      %484 = vmatpush.msra.mxu0 1.0
      %485 = vmatpush.msra.mxu0 1.0
      %486 = vmatpush.msra.mxu0 1.0
      %487 = vmatpush.msra.mxu0 1.0
      %488 = vmatpush.msra.mxu0 1.0
      %489 = vmatpush.msra.mxu0 1.0
      %490 = vmatpush.msra.mxu0 1.0
      %491 = vmatpush.msra.mxu0 1.0
      %492 = vmatpush.msra.mxu0 1.0
      %493 = vmatpush.msra.mxu0 1.0
      %494 = vmatpush.msra.mxu0 1.0
      %495 = vmatpush.msra.mxu0 1.0
      %496 = vmatpush.msra.mxu0 1.0
      %497 = vmatpush.msra.mxu0 1.0
      %498 = vmatpush.msra.mxu0 1.0
      %v499 = vand.u32 %v396, 4294901760
      %v500 = vsub.f32 %v396, %v499
      %v501 = vand.u32 %v500, 4294901760
      %502 = vmatmul.f32.gmra.mxu0 %v501
      %v503 = vpop.f32.mrf.mxu0
      %v504 = vadd.f32 %v476, %v503
      %v505 = vand.u32 %v397, 4294901760
      %v506 = vsub.f32 %v397, %v505
      %v507 = vand.u32 %v506, 4294901760
      %508 = vmatmul.f32.gmra.mxu0 %v507
      %v509 = vpop.f32.mrf.mxu0
      %v510 = vadd.f32 %v481, %v509
      %511 = vdwg.mxu0
      %512 = vmatpush.msra.mxu0 0.0
      %513 = vmatpush.msra.mxu0 0.0
      %514 = vmatpush.msra.mxu0 0.0
      %515 = vmatpush.msra.mxu0 0.0
      %516 = vmatpush.msra.mxu0 0.0
      %517 = vmatpush.msra.mxu0 0.0
      %518 = vmatpush.msra.mxu0 0.0
      %519 = vmatpush.msra.mxu0 0.0
      %520 = vmatpush.msra.mxu0 0.0
      %521 = vmatpush.msra.mxu0 0.0
      %522 = vmatpush.msra.mxu0 0.0
      %523 = vmatpush.msra.mxu0 0.0
      %524 = vmatpush.msra.mxu0 0.0
      %525 = vmatpush.msra.mxu0 0.0
      %526 = vmatpush.msra.mxu0 0.0
      %527 = vmatpush.msra.mxu0 0.0
      %v528 = vand.u32 %v396, 4294901760
      %529 = vmatmul.f32.gmra.mxu0 %v528
      %v530 = vpop.f32.mrf.mxu0
      %v531 = vadd.f32 %v504, %v530
      %v532 = vand.u32 %v397, 4294901760
      %533 = vmatmul.f32.gmra.mxu0 %v532
      %v534 = vpop.f32.mrf.mxu0
      %v535 = vadd.f32 %v510, %v534
      %536 = vdwg.mxu0
      %537 = vmatpush.msra.mxu0 1.0
      %538 = vmatpush.msra.mxu0 1.0
      %539 = vmatpush.msra.mxu0 1.0
      %540 = vmatpush.msra.mxu0 1.0
      %541 = vmatpush.msra.mxu0 1.0
      %542 = vmatpush.msra.mxu0 1.0
      %543 = vmatpush.msra.mxu0 1.0
      %544 = vmatpush.msra.mxu0 1.0
      %545 = vmatpush.msra.mxu0 1.0
      %546 = vmatpush.msra.mxu0 1.0
      %547 = vmatpush.msra.mxu0 1.0
      %548 = vmatpush.msra.mxu0 1.0
      %549 = vmatpush.msra.mxu0 1.0
      %550 = vmatpush.msra.mxu0 1.0
      %551 = vmatpush.msra.mxu0 1.0
      %552 = vmatpush.msra.mxu0 1.0
      %v553 = vand.u32 %v396, 4294901760
      %554 = vmatmul.f32.gmra.mxu0 %v553
      %v555 = vpop.f32.mrf.mxu0
      %v556 = vadd.f32 %v531, %v555
      %v557 = vand.u32 %v397, 4294901760
      %558 = vmatmul.f32.gmra.mxu0 %v557
      %v559 = vpop.f32.mrf.mxu0
      %v560 = vadd.f32 %v535, %v559
      %561 = vdwg.mxu0
      %v562 = vsub.f32 %v381, %v556
      %v563 = vsub.f32 %v383, %v560
      %v564 = vsub.f32 0.0, %v562
      %v565 = vsub.f32 0.0, %v563
      %v566 = vmul.f32 %v564, 1.442695
      %v567 = vpow.pop %v566
      %v568 = vmul.f32 %v565, 1.442695
      %v569 = vpow.pop %v568
      %v570 = vsub.f32 1.0, %v567
      %v571 = vsub.f32 1.0, %v569
      %v572 = vmul.f32 %v570, %v570
      %v573 = vmul.f32 %v571, %v571
      %v574 = vmul.f32 %v572, %v562
      %v575 = vmul.f32 %v573, %v563
      %p576 = scmp.ne.s32.totalorder %s13, 2
      // Predicated region
      $region29: #{tpu_custom_call.1} parent=27 // pred_check
        %p577 = pneg %p576
      $region30: #{tpu_custom_call.1} parent=27 // pred_check_branch
        %579 = sbr.rel (%p577) target = $region32
      $region31: #{tpu_custom_call.1} parent=27 // pred_region
        %vm580 = vcmask 7168
        %v581 = vsel %vm580, %v574, 0.0
        %v582 = vsel %vm580, %v575, 0.0
        %v583 = vadd.f32 %v581, %v582
        %v584 = vrot.slane %v583, 4
        %v585 = vadd.f32 %v583, %v584
        %v586 = vrot.slane %v585, 2
        %v587 = vadd.f32 %v585, %v586
        %v588 = vrot.slane %v587, 1
        %v589 = vadd.f32 %v587, %v588
        %vm590 = vcmask 0
        %591 = vst.msk [vmem:[%s203] sm:$0x1] %vm590, %v589
      $region32: #{tpu_custom_call.1} parent=27 // pred_fallthru
        _
      %p592 = scmp.eq.s32.totalorder %s13, 2
      // Predicated region
      $region33: #{tpu_custom_call.1} parent=27 // pred_check
        %p593 = pneg %p592
      $region34: #{tpu_custom_call.1} parent=27 // pred_check_branch
        %595 = sbr.rel (%p593) target = $region36
      $region35: #{tpu_custom_call.1} parent=27 // pred_region
        %v596 = vlaneseq
        %v597 = vshrl.u32 %v596, 7
        %v598 = vadd.s32 %v597, 8
        %vm599 = vcmp.lt.s32.totalorder %v597, 8
        %vm600 = vcmp.lt.s32.totalorder %v598, 8
        %v601 = vsel %vm599, %v574, 0.0
        %v602 = vsel %vm600, %v575, 0.0
        %vm603 = vcmask 7168
        %v604 = vsel %vm603, %v601, 0.0
        %v605 = vsel %vm603, %v602, 0.0
        %v606 = vadd.f32 %v604, %v605
        %v607 = vrot.slane %v606, 4
        %v608 = vadd.f32 %v606, %v607
        %v609 = vrot.slane %v608, 2
        %v610 = vadd.f32 %v608, %v609
        %v611 = vrot.slane %v610, 1
        %v612 = vadd.f32 %v610, %v611
        %vm613 = vcmask 0
        %614 = vst.msk [vmem:[%s203] sm:$0x1] %vm613, %v612
      $region36: #{tpu_custom_call.1} parent=27 // pred_fallthru
        _
      %p615 = scmp.lt.s32.totalorder %s13, 2
      %s616 = scalar_select %p615, %s13, 2
      %s617 = scalar_lea.vmem %s2, %s616
      // Predicated region
      $region37: #{tpu_custom_call.1} parent=27 // pred_check
        %p618 = pneg %p83
      $region38: #{tpu_custom_call.1} parent=27 // pred_check_branch
        %620 = sbr.rel (%p618) target = $region40
      $region39: #{tpu_custom_call.1} parent=27 // pred_region
        _
      $region40: #{tpu_custom_call.1} parent=27 // pred_fallthru
        _
    $region28: #{tpu_custom_call.1} parent=5 // pred_fallthru
      _
    %p621 = scmp.le.s32.totalorder 2, %s8
    // Predicated region
    $region41: #{tpu_custom_call.1} parent=5 // pred_check
      %p622 = pneg %p621
    $region42: #{tpu_custom_call.1} parent=5 // pred_check_branch
      %624 = sbr.rel (%p622) target = $region44
    $region43: #{tpu_custom_call.1} parent=5 // pred_region
      %s625 = ssub.s32 %s8, 2
      // Predicated region
      $region45: #{tpu_custom_call.1} parent=43 // pred_check
        %p626 = pneg %p89
      $region46: #{tpu_custom_call.1} parent=43 // pred_check_branch
        %628 = sbr.rel (%p626) target = $region48
      $region47: #{tpu_custom_call.1} parent=43 // pred_region
        %p629 = scmp.lt.s32.totalorder %s14, 2
        %s630 = scalar_select %p629, %s14, 2
        %s631 = scalar_lea.vmem %s2, %s630
      $region48: #{tpu_custom_call.1} parent=43 // pred_fallthru
        _
    $region44: #{tpu_custom_call.1} parent=5 // pred_fallthru
      _
  $region6: #{tpu_custom_call.1} parent=0 // loop_footer
    %s12 = sadd.s32 1, %s8
  $region7: #{tpu_custom_call.1} parent=0 // loop_footer_branch
    %7 = sbr.rel target = $region3
  $region8: #{tpu_custom_call.1} parent=0 // loop_exit
    _

</llo_original>
